<compile_context>
chip_gen: v6e
topology: v6e:2x2x1
jax: 0.10.0
libtpu: 0.0.40
codegen_flags: <defaults>
</compile_context>

<pallas_src>
import math
from functools import partial

import jax
import jax.numpy as jnp
from jax.experimental import pallas as pl
from jax.experimental.pallas import tpu as pltpu


_LANE = 128
_ROWG = 16                              # block-row granularity (covers bf16 (16,128) tiling)
_TARGET_OUT_BLOCK_ELEMS = 256 * 1024    # ~1 MiB f32 output block per grid step


def _rswaf_kernel(x_ref, e_ref, gt_ref, o_ref, *, n_splits):
    # x_ref : (R, 128)       input chunk, lane-dense, caller dtype
    # e_ref : (128, 128*G)   bf16 expansion matrix, E[i, c] = (c // G == i)   (resident)
    # gt_ref: (1, 128*G)     f32 lane-tiled grid,   gt[c] = grid[c % G]        (resident)
    # o_ref : (R, 128*G)     out[r, c] = 1 - tanh(x[r, c//G] - grid[c%G])^2  == flat (..., G)
    e = e_ref[...]
    if n_splits == 1:
        # bf16 input: one exact MXU replication pass (0/1 matrix, f32 accumulation).
        x_rep = jnp.dot(x_ref[...], e, preferred_element_type=jnp.float32)
    else:
        # f32 input: exact 3-way bf16 split (hi + mid + lo reconstructs x to ~1 ulp f32),
        # so the replication is exact without relying on any f32-matmul precision mode.
        x = x_ref[...].astype(jnp.float32)
        hi = x.astype(jnp.bfloat16)
        r1 = x - hi.astype(jnp.float32)
        mid = r1.astype(jnp.bfloat16)
        r2 = r1 - mid.astype(jnp.float32)
        lo = r2.astype(jnp.bfloat16)
        x_rep = (jnp.dot(hi, e, preferred_element_type=jnp.float32)
                 + jnp.dot(mid, e, preferred_element_type=jnp.float32)
                 + jnp.dot(lo, e, preferred_element_type=jnp.float32))
    t = jnp.tanh(x_rep - gt_ref[...])                 # VPU sub + EUP tanh, all f32
    o_ref[...] = (1.0 - t * t).astype(o_ref.dtype)    # lane-dense unmasked store, caller dtype


def reflectional_switch_forward(x, grid, inv_denominator=None):
    """Pallas forward of ReflectionalSwitchFunction.

    x: any-shaped float array; grid: (G,).  Returns x.shape + (G,) in x.dtype.
    `inv_denominator` is accepted for API parity but (as in the PyTorch forward)
    does not affect the returned value.
    """
    del inv_denominator  # only used by the backward pass in RSWAFFunction
    G = int(grid.shape[0])
    W = _LANE * G
    orig_shape = tuple(x.shape)
    out_dtype = x.dtype
    M = int(math.prod(orig_shape)) if orig_shape else 1

    # ---- flatten; pad only when M is not already lane-aligned (common case: no copy) ----
    xf = jnp.reshape(x, (-1,))
    Mp = pl.cdiv(M, _LANE) * _LANE
    if Mp != M:
        xf = jnp.pad(xf, (0, Mp - M))
    total_rows = Mp // _LANE
    xf = xf.reshape(total_rows, _LANE)          # free (contiguous) reshape, lane-dense blocks

    # ---- block size: ~1 MiB output blocks; >=4 chunks for big inputs; no forced split for tiny ----
    if total_rows <= _ROWG:
        blk_rows = total_rows                   # single full-dim block
    else:
        tgt = max(_ROWG, (_TARGET_OUT_BLOCK_ELEMS // W // _ROWG) * _ROWG)
        quarter = (pl.cdiv(total_rows, 4) // _ROWG) * _ROWG
        blk_rows = max(_ROWG, min(tgt, quarter))
    num_chunks = pl.cdiv(total_rows, blk_rows)  # ragged last block is masked by Pallas

    # ---- tiny resident constants ----
    col = jnp.arange(W, dtype=jnp.int32) // G
    row = jnp.arange(_LANE, dtype=jnp.int32)
    e_mat = (row[:, None] == col[None, :]).astype(jnp.bfloat16)      # (128, W) 0/1 matrix
    gt = jnp.tile(grid.astype(jnp.float32), _LANE).reshape(1, W)      # gt[c] = grid[c % G]

    n_splits = 1 if x.dtype == jnp.bfloat16 else 3
    in_bytes = jnp.dtype(x.dtype).itemsize
    out_bytes = jnp.dtype(out_dtype).itemsize
    cost = pl.CostEstimate(
        flops=int(2 * Mp * _LANE * G * n_splits + 5 * Mp * G),
        transcendentals=int(Mp * G),
        bytes_accessed=int(Mp * in_bytes + Mp * G * out_bytes + e_mat.size * 2 + W * 4),
    )

    out2d = pl.pallas_call(
        partial(_rswaf_kernel, n_splits=n_splits),
        out_shape=jax.ShapeDtypeStruct((total_rows, W), out_dtype),
        grid_spec=pltpu.PrefetchScalarGridSpec(
            num_scalar_prefetch=0,
            grid=(num_chunks,),
            in_specs=[
                pl.BlockSpec((blk_rows, _LANE), lambda p: (p, 0)),   # x chunk (lane-dense)
                pl.BlockSpec((_LANE, W), lambda p: (0, 0)),          # E (resident)
                pl.BlockSpec((1, W), lambda p: (0, 0)),              # tiled grid (resident)
            ],
            out_specs=pl.BlockSpec((blk_rows, W), lambda p: (p, 0)),
        ),
        compiler_params=pltpu.CompilerParams(dimension_semantics=("parallel",)),
        cost_estimate=cost,
    )(xf, e_mat, gt)

    # ---- (..., G) view: free reshape in the aligned case; slice only for ragged tails ----
    if Mp == M:
        return out2d.reshape(orig_shape + (G,))
    return out2d.reshape(-1)[: M * G].reshape(orig_shape + (G,))


def _reference(x, grid):
    t = jnp.tanh(x[..., None] - grid)
    return 1.0 - t * t


if __name__ == "__main__":
    # ReflectionalSwitchFunction(grid_min=-1.2, grid_max=0.2, num_grids=8, inv_denominator=0.5)
    batch, features, num_grids = 2, 128, 8

    key = jax.random.PRNGKey(0)
    x = jax.random.normal(key, (batch, features), dtype=jnp.float32)
    grid = jnp.linspace(-1.2, 0.2, num_grids, dtype=jnp.float32)
    inv_denominator = jnp.float32(0.5)   # backward-only in the PyTorch module

    out = jax.block_until_ready(reflectional_switch_forward(x, grid, inv_denominator))
    ref = _reference(x, grid)
    assert out.shape == (batch, features, num_grids), out.shape
    assert out.dtype == x.dtype
    assert jnp.allclose(out, ref, atol=1e-5, rtol=1e-5), float(jnp.max(jnp.abs(out - ref)))

    # bf16 I/O path: single-pass MXU replication, bf16 stores straight from the kernel.
    xb = x.astype(jnp.bfloat16)
    outb = jax.block_until_ready(reflectional_switch_forward(xb, grid))
    refb = _reference(xb.astype(jnp.float32), grid)
    assert outb.dtype == jnp.bfloat16
    assert jnp.allclose(outb.astype(jnp.float32), refb, atol=1.5e-2, rtol=0)

    # Ragged flattened size (not a multiple of 128): exercises the pad + tail-slice path.
    x2 = jax.random.normal(jax.random.PRNGKey(1), (3, 496), dtype=jnp.float32)
    out2 = jax.block_until_ready(reflectional_switch_forward(x2, grid))
    ref2 = _reference(x2, grid)
    assert out2.shape == (3, 496, num_grids)
    assert jnp.allclose(out2, ref2, atol=1e-5, rtol=1e-5)

    print("KERNEL_OK")
</pallas_src>

<mosaic_0001>
module attributes {stable_mosaic.version = 11 : i64} {
  func.func @_rswaf_kernel(%arg0: i32, %arg1: memref<2x128xf32, #tpu.memory_space<vmem>>, %arg2: memref<128x1024xbf16, #tpu.memory_space<vmem>>, %arg3: memref<1x1024xf32, #tpu.memory_space<vmem>>, %arg4: memref<2x1024xf32, #tpu.memory_space<vmem>>) attributes {dimension_semantics = [#tpu.dimension_semantics<parallel>], iteration_bounds = array<i64: 1>, scalar_prefetch = 0 : i64, scratch_operands = 0 : i64, tpu.core_type = #tpu.core_type<tc>, window_params = [{transform_indices = @transform_0, window_bounds = array<i64: 2, 128>}, {pipeline_mode = #tpu.pipeline_mode<synchronous>, transform_indices = @transform_1, window_bounds = array<i64: 128, 1024>}, {pipeline_mode = #tpu.pipeline_mode<synchronous>, transform_indices = @transform_2, window_bounds = array<i64: 1, 1024>}, {transform_indices = @transform_3, window_bounds = array<i64: 2, 1024>}]} {
    %c0 = arith.constant 0 : index
    %c0_0 = arith.constant 0 : index
    %0 = vector.load %arg2[%c0, %c0_0] : memref<128x1024xbf16, #tpu.memory_space<vmem>>, vector<128x1024xbf16>
    %c0_1 = arith.constant 0 : index
    %c0_2 = arith.constant 0 : index
    %1 = vector.load %arg1[%c0_1, %c0_2] : memref<2x128xf32, #tpu.memory_space<vmem>>, vector<2x128xf32>
    %2 = arith.truncf %1 : vector<2x128xf32> to vector<2x128xbf16>
    %3 = arith.extf %2 : vector<2x128xbf16> to vector<2x128xf32>
    %4 = arith.subf %1, %3 : vector<2x128xf32>
    %5 = arith.truncf %4 : vector<2x128xf32> to vector<2x128xbf16>
    %6 = arith.extf %5 : vector<2x128xbf16> to vector<2x128xf32>
    %7 = arith.subf %4, %6 : vector<2x128xf32>
    %8 = arith.truncf %7 : vector<2x128xf32> to vector<2x128xbf16>
    %cst = arith.constant dense<0.000000e+00> : vector<2x1024xf32>
    %9 = tpu.matmul %2, %0, %cst {dimension_numbers = #tpu.dot_dimension_numbers<[1], [0], [0], [1], [0, 0, 1, 1], [], []>} : vector<2x128xbf16>, vector<128x1024xbf16>, vector<2x1024xf32> -> vector<2x1024xf32>
    %cst_3 = arith.constant dense<0.000000e+00> : vector<2x1024xf32>
    %10 = tpu.matmul %5, %0, %cst_3 {dimension_numbers = #tpu.dot_dimension_numbers<[1], [0], [0], [1], [0, 0, 1, 1], [], []>} : vector<2x128xbf16>, vector<128x1024xbf16>, vector<2x1024xf32> -> vector<2x1024xf32>
    %11 = arith.addf %9, %10 : vector<2x1024xf32>
    %cst_4 = arith.constant dense<0.000000e+00> : vector<2x1024xf32>
    %12 = tpu.matmul %8, %0, %cst_4 {dimension_numbers = #tpu.dot_dimension_numbers<[1], [0], [0], [1], [0, 0, 1, 1], [], []>} : vector<2x128xbf16>, vector<128x1024xbf16>, vector<2x1024xf32> -> vector<2x1024xf32>
    %13 = arith.addf %11, %12 : vector<2x1024xf32>
    %c0_5 = arith.constant 0 : index
    %c0_6 = arith.constant 0 : index
    %14 = vector.load %arg3[%c0_5, %c0_6] : memref<1x1024xf32, #tpu.memory_space<vmem>>, vector<1x1024xf32>
    %15 = vector.broadcast %14 : vector<1x1024xf32> to vector<2x1024xf32>
    %16 = arith.subf %13, %15 : vector<2x1024xf32>
    %17 = math.tanh %16 : vector<2x1024xf32>
    %18 = arith.mulf %17, %17 : vector<2x1024xf32>
    %cst_7 = arith.constant 1.000000e+00 : f32
    %19 = vector.broadcast %cst_7 : f32 to vector<2x1024xf32>
    %20 = arith.subf %19, %18 : vector<2x1024xf32>
    %c0_8 = arith.constant 0 : index
    %c0_9 = arith.constant 0 : index
    %21 = vector.load %arg4[%c0_8, %c0_9] : memref<2x1024xf32, #tpu.memory_space<vmem>>, vector<2x1024xf32>
    tpu.vector_store %arg4[%c0_8, %c0_9], %20 {strides = array<i32>} : memref<2x1024xf32, #tpu.memory_space<vmem>>, vector<2x1024xf32>,
    return
  }
  func.func @transform_0(%arg0: i32) -> (i32, i32) {
    %c0_i32 = arith.constant 0 : i32
    %c0_i32_0 = arith.constant 0 : i32
    return %arg0, %c0_i32 : i32, i32
  }
  func.func @transform_1(%arg0: i32) -> (i32, i32) {
    %c0_i32 = arith.constant 0 : i32
    %c0_i32_0 = arith.constant 0 : i32
    %c0_i32_1 = arith.constant 0 : i32
    return %c0_i32, %c0_i32_0 : i32, i32
  }
  func.func @transform_2(%arg0: i32) -> (i32, i32) {
    %c0_i32 = arith.constant 0 : i32
    %c0_i32_0 = arith.constant 0 : i32
    %c0_i32_1 = arith.constant 0 : i32
    return %c0_i32, %c0_i32_0 : i32, i32
  }
  func.func @transform_3(%arg0: i32) -> (i32, i32) {
    %c0_i32 = arith.constant 0 : i32
    %c0_i32_0 = arith.constant 0 : i32
    return %arg0, %c0_i32 : i32, i32
  }
}

</mosaic_0001>

<llo_original>
// kernel: tpu_custom_call.1
$region0: #{tpu_custom_call.1}
  #allocation0 [shape = 'u32[]', space=smem, size = 0x4, offset = 0x4, fixed_abs, tag = 'smem constant byte address 0x4 - core index']
  #allocation1 [shape = 'u32[144,128]{1,0:T(1,128)}', space=vmem, size = 0x12000, scoped, tag = 'internal scratch']
  %s0 = inlined_call_operand.hbm [shape: f32[2,128], index: 0, kind: input, shape index: {}]
  %s1 = inlined_call_operand.hbm [shape: bf16[128,1024], index: 1, kind: input, shape index: {}]
  %s2 = inlined_call_operand.hbm [shape: f32[1,1024], index: 2, kind: input, shape index: {}]
  %s3 = inlined_call_operand.hbm [shape: f32[2,1024], index: 3, kind: output, shape index: {}]
  %s4 = sld [smem:[#allocation0]]
  $region34: #{tpu_custom_call.1} parent=0
    _
  %s6 = ssub.s32 1, %s4
  %s7 = scalar_select 0, %s6, %s4
  $region1: #{tpu_custom_call.1} parent=0
    #allocation2 [shape = 'u8[1024]{0}', space=vmem, size = 0x400, scoped, tag = 'input window, operand 0, single buffered']
    #allocation3 [shape = 's32[1]{0}', space=sflag, size = 0x4, scoped, tag = 'scoped memory for tpu_custom_call.1']
    #allocation4 [shape = 's32[1]{0}', space=sflag, size = 0x4, scoped, tag = 'scoped memory for tpu_custom_call.1']
    #allocation5 [shape = 'u8[262144]{0}', space=vmem, size = 0x40000, scoped, tag = 'input window, operand 1, single buffered']
    #allocation6 [shape = 's32[1]{0}', space=sflag, size = 0x4, scoped, tag = 'scoped memory for tpu_custom_call.1']
    #allocation7 [shape = 'u8[4096]{0}', space=vmem, size = 0x1000, scoped, tag = 'input window, operand 2, single buffered']
    #allocation8 [shape = 'u8[8192]{0}', space=vmem, size = 0x2000, scoped, tag = 'output window, operand 0, single buffered']
    %8 = vsyncpa [#allocation3], 0
    %9 = vsyncpa [#allocation6], 0
    %10 = vsyncpa [#allocation4], 0
    // Predicated region
    $region2: #{tpu_custom_call.1} parent=1 // pred_check
      _
    $region3: #{tpu_custom_call.1} parent=1 // pred_check_branch
      %12 = sbr.rel (0) target = $region5
    $region4: #{tpu_custom_call.1} parent=1 // pred_region
      %s14 = ssub.s32 32, 32
      %15 = vsyncadd [#allocation3], %s14
      %s17 = sshll.u32 [#allocation2], 4
      %s18 = int_to_ptr.vmem [resolvable:$true] %s17
      %20 = dma.hbm_to_vmem [thread:$0]  %s0, 32, %s18, [#allocation3]
    $region5: #{tpu_custom_call.1} parent=1 // pred_fallthru
      _
    // Predicated region
    $region6: #{tpu_custom_call.1} parent=1 // pred_check
      _
    $region7: #{tpu_custom_call.1} parent=1 // pred_check_branch
      %22 = sbr.rel (0) target = $region9
    $region8: #{tpu_custom_call.1} parent=1 // pred_region
      %s24 = ssub.s32 8192, 8192
      %25 = vsyncadd [#allocation6], %s24
      %s26 = sshll.u32 [#allocation5], 4
      %s27 = int_to_ptr.vmem [resolvable:$true] %s26
      %32 = dma.hbm_to_vmem [thread:$0]  %s1, 8192, %s27, [#allocation6], 512, 512, 32
    $region9: #{tpu_custom_call.1} parent=1 // pred_fallthru
      _
    // Predicated region
    $region10: #{tpu_custom_call.1} parent=1 // pred_check
      _
    $region11: #{tpu_custom_call.1} parent=1 // pred_check_branch
      %34 = sbr.rel (0) target = $region13
    $region12: #{tpu_custom_call.1} parent=1 // pred_region
      %s36 = ssub.s32 128, 128
      %37 = vsyncadd [#allocation6], %s36
      %s39 = sshll.u32 [#allocation7], 4
      %s40 = int_to_ptr.vmem [resolvable:$true] %s39
      %42 = dma.hbm_to_vmem [thread:$0]  %s2, 128, %s40, [#allocation6]
    $region13: #{tpu_custom_call.1} parent=1 // pred_fallthru
      _
    // Predicated region
    $region14: #{tpu_custom_call.1} parent=1 // pred_check
      _
    $region15: #{tpu_custom_call.1} parent=1 // pred_check_branch
      %44 = sbr.rel (0) target = $region17
    $region16: #{tpu_custom_call.1} parent=1 // pred_region
      %45 = dma.done [#allocation3], 32
    $region17: #{tpu_custom_call.1} parent=1 // pred_fallthru
      _
    // Predicated region
    $region18: #{tpu_custom_call.1} parent=1 // pred_check
      _
    $region19: #{tpu_custom_call.1} parent=1 // pred_check_branch
      %47 = sbr.rel (0) target = $region21
    $region20: #{tpu_custom_call.1} parent=1 // pred_region
      %48 = dma.done [#allocation6], 8192
    $region21: #{tpu_custom_call.1} parent=1 // pred_fallthru
      _
    // Predicated region
    $region22: #{tpu_custom_call.1} parent=1 // pred_check
      _
    $region23: #{tpu_custom_call.1} parent=1 // pred_check_branch
      %50 = sbr.rel (0) target = $region25
    $region24: #{tpu_custom_call.1} parent=1 // pred_region
      %51 = dma.done [#allocation6], 128
    $region25: #{tpu_custom_call.1} parent=1 // pred_fallthru
      _
    %v53 = vld [vmem:[#allocation5] sm:$0xff]
    %v54 = vld [vmem:[#allocation5 + $0x8] sm:$0xff]
    %v55 = vld [vmem:[#allocation5 + $0x10] sm:$0xff]
    %v56 = vld [vmem:[#allocation5 + $0x18] sm:$0xff]
    %v57 = vld [vmem:[#allocation5 + $0x20] sm:$0xff]
    %v58 = vld [vmem:[#allocation5 + $0x28] sm:$0xff]
    %v59 = vld [vmem:[#allocation5 + $0x30] sm:$0xff]
    %v60 = vld [vmem:[#allocation5 + $0x38] sm:$0xff]
    %v61 = vld [vmem:[#allocation5 + $0x40] sm:$0xff]
    %v62 = vld [vmem:[#allocation5 + $0x48] sm:$0xff]
    %v63 = vld [vmem:[#allocation5 + $0x50] sm:$0xff]
    %v64 = vld [vmem:[#allocation5 + $0x58] sm:$0xff]
    %v65 = vld [vmem:[#allocation5 + $0x60] sm:$0xff]
    %v66 = vld [vmem:[#allocation5 + $0x68] sm:$0xff]
    %v67 = vld [vmem:[#allocation5 + $0x70] sm:$0xff]
    %v68 = vld [vmem:[#allocation5 + $0x78] sm:$0xff]
    %v69 = vld [vmem:[#allocation5 + $0x80] sm:$0xff]
    %v70 = vld [vmem:[#allocation5 + $0x88] sm:$0xff]
    %v71 = vld [vmem:[#allocation5 + $0x90] sm:$0xff]
    %v72 = vld [vmem:[#allocation5 + $0x98] sm:$0xff]
    %v73 = vld [vmem:[#allocation5 + $0xa0] sm:$0xff]
    %v74 = vld [vmem:[#allocation5 + $0xa8] sm:$0xff]
    %v75 = vld [vmem:[#allocation5 + $0xb0] sm:$0xff]
    %v76 = vld [vmem:[#allocation5 + $0xb8] sm:$0xff]
    %v77 = vld [vmem:[#allocation5 + $0xc0] sm:$0xff]
    %v78 = vld [vmem:[#allocation5 + $0xc8] sm:$0xff]
    %v79 = vld [vmem:[#allocation5 + $0xd0] sm:$0xff]
    %v80 = vld [vmem:[#allocation5 + $0xd8] sm:$0xff]
    %v81 = vld [vmem:[#allocation5 + $0xe0] sm:$0xff]
    %v82 = vld [vmem:[#allocation5 + $0xe8] sm:$0xff]
    %v83 = vld [vmem:[#allocation5 + $0xf0] sm:$0xff]
    %v84 = vld [vmem:[#allocation5 + $0xf8] sm:$0xff]
    %v85 = vld [vmem:[#allocation5 + $0x100] sm:$0xff]
    %v86 = vld [vmem:[#allocation5 + $0x108] sm:$0xff]
    %v87 = vld [vmem:[#allocation5 + $0x110] sm:$0xff]
    %v88 = vld [vmem:[#allocation5 + $0x118] sm:$0xff]
    %v89 = vld [vmem:[#allocation5 + $0x120] sm:$0xff]
    %v90 = vld [vmem:[#allocation5 + $0x128] sm:$0xff]
    %v91 = vld [vmem:[#allocation5 + $0x130] sm:$0xff]
    %v92 = vld [vmem:[#allocation5 + $0x138] sm:$0xff]
    %v93 = vld [vmem:[#allocation5 + $0x140] sm:$0xff]
    %v94 = vld [vmem:[#allocation5 + $0x148] sm:$0xff]
    %v95 = vld [vmem:[#allocation5 + $0x150] sm:$0xff]
    %v96 = vld [vmem:[#allocation5 + $0x158] sm:$0xff]
    %v97 = vld [vmem:[#allocation5 + $0x160] sm:$0xff]
    %v98 = vld [vmem:[#allocation5 + $0x168] sm:$0xff]
    %v99 = vld [vmem:[#allocation5 + $0x170] sm:$0xff]
    %v100 = vld [vmem:[#allocation5 + $0x178] sm:$0xff]
    %v101 = vld [vmem:[#allocation5 + $0x180] sm:$0xff]
    %v102 = vld [vmem:[#allocation5 + $0x188] sm:$0xff]
    %v103 = vld [vmem:[#allocation5 + $0x190] sm:$0xff]
    %v104 = vld [vmem:[#allocation5 + $0x198] sm:$0xff]
    %v105 = vld [vmem:[#allocation5 + $0x1a0] sm:$0xff]
    %v106 = vld [vmem:[#allocation5 + $0x1a8] sm:$0xff]
    %v107 = vld [vmem:[#allocation5 + $0x1b0] sm:$0xff]
    %v108 = vld [vmem:[#allocation5 + $0x1b8] sm:$0xff]
    %v109 = vld [vmem:[#allocation5 + $0x1c0] sm:$0xff]
    %v110 = vld [vmem:[#allocation5 + $0x1c8] sm:$0xff]
    %v111 = vld [vmem:[#allocation5 + $0x1d0] sm:$0xff]
    %v112 = vld [vmem:[#allocation5 + $0x1d8] sm:$0xff]
    %v113 = vld [vmem:[#allocation5 + $0x1e0] sm:$0xff]
    %v114 = vld [vmem:[#allocation5 + $0x1e8] sm:$0xff]
    %v115 = vld [vmem:[#allocation5 + $0x1f0] sm:$0xff]
    %v116 = vld [vmem:[#allocation5 + $0x1f8] sm:$0xff]
    %v117 = vld [vmem:[#allocation2] sm:$0x3]
    %v118 = vpack.c.bf16 %v117, %v117
    %v119 = vunpack.c.l.bf16 %v118
    %v120 = vsub.f32 %v117, %v119
    %v121 = vpack.c.bf16 %v120, %v120
    %v122 = vunpack.c.l.bf16 %v121
    %v123 = vsub.f32 %v120, %v122
    %v124 = vpack.c.bf16 %v123, %v123
    %v189 = vunpack.c.l.b16 %v53
    %v190 = vunpack.c.h.b16 %v53
    %v191 = vunpack.c.l.b16 %v54
    %v192 = vunpack.c.h.b16 %v54
    %v193 = vunpack.c.l.b16 %v55
    %v194 = vunpack.c.h.b16 %v55
    %v195 = vunpack.c.l.b16 %v56
    %v196 = vunpack.c.h.b16 %v56
    %v197 = vunpack.c.l.b16 %v57
    %v198 = vunpack.c.h.b16 %v57
    %v199 = vunpack.c.l.b16 %v58
    %v200 = vunpack.c.h.b16 %v58
    %v201 = vunpack.c.l.b16 %v59
    %v202 = vunpack.c.h.b16 %v59
    %v203 = vunpack.c.l.b16 %v60
    %v204 = vunpack.c.h.b16 %v60
    %v205 = vunpack.c.l.b16 %v61
    %v206 = vunpack.c.h.b16 %v61
    %v207 = vunpack.c.l.b16 %v62
    %v208 = vunpack.c.h.b16 %v62
    %v209 = vunpack.c.l.b16 %v63
    %v210 = vunpack.c.h.b16 %v63
    %v211 = vunpack.c.l.b16 %v64
    %v212 = vunpack.c.h.b16 %v64
    %v213 = vunpack.c.l.b16 %v65
    %v214 = vunpack.c.h.b16 %v65
    %v215 = vunpack.c.l.b16 %v66
    %v216 = vunpack.c.h.b16 %v66
    %v217 = vunpack.c.l.b16 %v67
    %v218 = vunpack.c.h.b16 %v67
    %v219 = vunpack.c.l.b16 %v68
    %v220 = vunpack.c.h.b16 %v68
    %v221 = vunpack.c.l.b16 %v69
    %v222 = vunpack.c.h.b16 %v69
    %v223 = vunpack.c.l.b16 %v70
    %v224 = vunpack.c.h.b16 %v70
    %v225 = vunpack.c.l.b16 %v71
    %v226 = vunpack.c.h.b16 %v71
    %v227 = vunpack.c.l.b16 %v72
    %v228 = vunpack.c.h.b16 %v72
    %v229 = vunpack.c.l.b16 %v73
    %v230 = vunpack.c.h.b16 %v73
    %v231 = vunpack.c.l.b16 %v74
    %v232 = vunpack.c.h.b16 %v74
    %v233 = vunpack.c.l.b16 %v75
    %v234 = vunpack.c.h.b16 %v75
    %v235 = vunpack.c.l.b16 %v76
    %v236 = vunpack.c.h.b16 %v76
    %v237 = vunpack.c.l.b16 %v77
    %v238 = vunpack.c.h.b16 %v77
    %v239 = vunpack.c.l.b16 %v78
    %v240 = vunpack.c.h.b16 %v78
    %v241 = vunpack.c.l.b16 %v79
    %v242 = vunpack.c.h.b16 %v79
    %v243 = vunpack.c.l.b16 %v80
    %v244 = vunpack.c.h.b16 %v80
    %v245 = vunpack.c.l.b16 %v81
    %v246 = vunpack.c.h.b16 %v81
    %v247 = vunpack.c.l.b16 %v82
    %v248 = vunpack.c.h.b16 %v82
    %v249 = vunpack.c.l.b16 %v83
    %v250 = vunpack.c.h.b16 %v83
    %v251 = vunpack.c.l.b16 %v84
    %v252 = vunpack.c.h.b16 %v84
    %v253 = vunpack.c.l.b16 %v85
    %v254 = vunpack.c.h.b16 %v85
    %v255 = vunpack.c.l.b16 %v86
    %v256 = vunpack.c.h.b16 %v86
    %v257 = vunpack.c.l.b16 %v87
    %v258 = vunpack.c.h.b16 %v87
    %v259 = vunpack.c.l.b16 %v88
    %v260 = vunpack.c.h.b16 %v88
    %v261 = vunpack.c.l.b16 %v89
    %v262 = vunpack.c.h.b16 %v89
    %v263 = vunpack.c.l.b16 %v90
    %v264 = vunpack.c.h.b16 %v90
    %v265 = vunpack.c.l.b16 %v91
    %v266 = vunpack.c.h.b16 %v91
    %v267 = vunpack.c.l.b16 %v92
    %v268 = vunpack.c.h.b16 %v92
    %v269 = vunpack.c.l.b16 %v93
    %v270 = vunpack.c.h.b16 %v93
    %v271 = vunpack.c.l.b16 %v94
    %v272 = vunpack.c.h.b16 %v94
    %v273 = vunpack.c.l.b16 %v95
    %v274 = vunpack.c.h.b16 %v95
    %v275 = vunpack.c.l.b16 %v96
    %v276 = vunpack.c.h.b16 %v96
    %v277 = vunpack.c.l.b16 %v97
    %v278 = vunpack.c.h.b16 %v97
    %v279 = vunpack.c.l.b16 %v98
    %v280 = vunpack.c.h.b16 %v98
    %v281 = vunpack.c.l.b16 %v99
    %v282 = vunpack.c.h.b16 %v99
    %v283 = vunpack.c.l.b16 %v100
    %v284 = vunpack.c.h.b16 %v100
    %v285 = vunpack.c.l.b16 %v101
    %v286 = vunpack.c.h.b16 %v101
    %v287 = vunpack.c.l.b16 %v102
    %v288 = vunpack.c.h.b16 %v102
    %v289 = vunpack.c.l.b16 %v103
    %v290 = vunpack.c.h.b16 %v103
    %v291 = vunpack.c.l.b16 %v104
    %v292 = vunpack.c.h.b16 %v104
    %v293 = vunpack.c.l.b16 %v105
    %v294 = vunpack.c.h.b16 %v105
    %v295 = vunpack.c.l.b16 %v106
    %v296 = vunpack.c.h.b16 %v106
    %v297 = vunpack.c.l.b16 %v107
    %v298 = vunpack.c.h.b16 %v107
    %v299 = vunpack.c.l.b16 %v108
    %v300 = vunpack.c.h.b16 %v108
    %v301 = vunpack.c.l.b16 %v109
    %v302 = vunpack.c.h.b16 %v109
    %v303 = vunpack.c.l.b16 %v110
    %v304 = vunpack.c.h.b16 %v110
    %v305 = vunpack.c.l.b16 %v111
    %v306 = vunpack.c.h.b16 %v111
    %v307 = vunpack.c.l.b16 %v112
    %v308 = vunpack.c.h.b16 %v112
    %v309 = vunpack.c.l.b16 %v113
    %v310 = vunpack.c.h.b16 %v113
    %v311 = vunpack.c.l.b16 %v114
    %v312 = vunpack.c.h.b16 %v114
    %v313 = vunpack.c.l.b16 %v115
    %v314 = vunpack.c.h.b16 %v115
    %v315 = vunpack.c.l.b16 %v116
    %v316 = vunpack.c.h.b16 %v116
    %v317 = vpack.c.b16 %v197, %v189
    %v318 = vpack.c.b16 %v198, %v190
    %v319 = vpack.c.b16 %v199, %v191
    %v320 = vpack.c.b16 %v200, %v192
    %v321 = vpack.c.b16 %v201, %v193
    %v322 = vpack.c.b16 %v202, %v194
    %v323 = vpack.c.b16 %v203, %v195
    %v324 = vpack.c.b16 %v204, %v196
    %v325 = vpack.c.b16 %v213, %v205
    %v326 = vpack.c.b16 %v214, %v206
    %v327 = vpack.c.b16 %v215, %v207
    %v328 = vpack.c.b16 %v216, %v208
    %v329 = vpack.c.b16 %v217, %v209
    %v330 = vpack.c.b16 %v218, %v210
    %v331 = vpack.c.b16 %v219, %v211
    %v332 = vpack.c.b16 %v220, %v212
    %v333 = vpack.c.b16 %v229, %v221
    %v334 = vpack.c.b16 %v230, %v222
    %v335 = vpack.c.b16 %v231, %v223
    %v336 = vpack.c.b16 %v232, %v224
    %v337 = vpack.c.b16 %v233, %v225
    %v338 = vpack.c.b16 %v234, %v226
    %v339 = vpack.c.b16 %v235, %v227
    %v340 = vpack.c.b16 %v236, %v228
    %v341 = vpack.c.b16 %v245, %v237
    %v342 = vpack.c.b16 %v246, %v238
    %v343 = vpack.c.b16 %v247, %v239
    %v344 = vpack.c.b16 %v248, %v240
    %v345 = vpack.c.b16 %v249, %v241
    %v346 = vpack.c.b16 %v250, %v242
    %v347 = vpack.c.b16 %v251, %v243
    %v348 = vpack.c.b16 %v252, %v244
    %v349 = vpack.c.b16 %v261, %v253
    %v350 = vpack.c.b16 %v262, %v254
    %v351 = vpack.c.b16 %v263, %v255
    %v352 = vpack.c.b16 %v264, %v256
    %v353 = vpack.c.b16 %v265, %v257
    %v354 = vpack.c.b16 %v266, %v258
    %v355 = vpack.c.b16 %v267, %v259
    %v356 = vpack.c.b16 %v268, %v260
    %v357 = vpack.c.b16 %v277, %v269
    %v358 = vpack.c.b16 %v278, %v270
    %v359 = vpack.c.b16 %v279, %v271
    %v360 = vpack.c.b16 %v280, %v272
    %v361 = vpack.c.b16 %v281, %v273
    %v362 = vpack.c.b16 %v282, %v274
    %v363 = vpack.c.b16 %v283, %v275
    %v364 = vpack.c.b16 %v284, %v276
    %v365 = vpack.c.b16 %v293, %v285
    %v366 = vpack.c.b16 %v294, %v286
    %v367 = vpack.c.b16 %v295, %v287
    %v368 = vpack.c.b16 %v296, %v288
    %v369 = vpack.c.b16 %v297, %v289
    %v370 = vpack.c.b16 %v298, %v290
    %v371 = vpack.c.b16 %v299, %v291
    %v372 = vpack.c.b16 %v300, %v292
    %v373 = vpack.c.b16 %v309, %v301
    %v374 = vpack.c.b16 %v310, %v302
    %v375 = vpack.c.b16 %v311, %v303
    %v376 = vpack.c.b16 %v312, %v304
    %v377 = vpack.c.b16 %v313, %v305
    %v378 = vpack.c.b16 %v314, %v306
    %v379 = vpack.c.b16 %v315, %v307
    %v380 = vpack.c.b16 %v316, %v308
    %445 = vmatprep.subr.bf16.mxu0 %v374
    %446 = vmatpush1.bf16.msra.mxu0 %v373
    %447 = vmatprep.subr.bf16.mxu0 %v366
    %448 = vmatpush1.bf16.msra.mxu0 %v365
    %449 = vmatprep.subr.bf16.mxu0 %v358
    %450 = vmatpush1.bf16.msra.mxu0 %v357
    %451 = vmatprep.subr.bf16.mxu0 %v350
    %452 = vmatpush1.bf16.msra.mxu0 %v349
    %453 = vmatprep.subr.bf16.mxu0 %v342
    %454 = vmatpush1.bf16.msra.mxu0 %v341
    %455 = vmatprep.subr.bf16.mxu0 %v334
    %456 = vmatpush1.bf16.msra.mxu0 %v333
    %457 = vmatprep.subr.bf16.mxu0 %v326
    %458 = vmatpush1.bf16.msra.mxu0 %v325
    %459 = vmatprep.subr.bf16.mxu0 %v318
    %460 = vmatpush1.bf16.msra.mxu0 %v317
    %461 = vmatprep.subr.bf16.mxu0 0
    %462 = vmatpush2.bf16.msra.mxu0 0
    %463 = vmatprep.subr.bf16.mxu0 0
    %464 = vmatpush2.bf16.msra.mxu0 0
    %465 = vmatprep.subr.bf16.mxu0 0
    %466 = vmatpush2.bf16.msra.mxu0 0
    %467 = vmatprep.subr.bf16.mxu0 0
    %468 = vmatpush2.bf16.msra.mxu0 0
    %469 = vmatprep.subr.bf16.mxu0 0
    %470 = vmatpush2.bf16.msra.mxu0 0
    %471 = vmatprep.subr.bf16.mxu0 0
    %472 = vmatpush2.bf16.msra.mxu0 0
    %473 = vmatprep.subr.bf16.mxu0 0
    %474 = vmatpush2.bf16.msra.mxu0 0
    %475 = vmatprep.subr.bf16.mxu0 0
    %476 = vmatpush2.bf16.msra.mxu0 0
    %477 = vmatprep.mubr.bf16.mxu0 0
    %478 = vmatmul.mubr.bf16.gmra.mxu0 %v121
    %v479 = vpop.f32.mrf.mxu0
    %v480 = vadd.f32 0.0, %v479
    %v481 = vpop.f32.mrf.mxu0
    %v482 = vadd.f32 0.0, %v481
    %v483 = vpop.f32.mrf.mxu0
    %v484 = vpop.f32.mrf.mxu0
    %485 = vdwg.mxu0
    %486 = vmatprep.subr.bf16.mxu0 %v376
    %487 = vmatpush1.bf16.msra.mxu0 %v375
    %488 = vmatprep.subr.bf16.mxu0 %v368
    %489 = vmatpush1.bf16.msra.mxu0 %v367
    %490 = vmatprep.subr.bf16.mxu0 %v360
    %491 = vmatpush1.bf16.msra.mxu0 %v359
    %492 = vmatprep.subr.bf16.mxu0 %v352
    %493 = vmatpush1.bf16.msra.mxu0 %v351
    %494 = vmatprep.subr.bf16.mxu0 %v344
    %495 = vmatpush1.bf16.msra.mxu0 %v343
    %496 = vmatprep.subr.bf16.mxu0 %v336
    %497 = vmatpush1.bf16.msra.mxu0 %v335
    %498 = vmatprep.subr.bf16.mxu0 %v328
    %499 = vmatpush1.bf16.msra.mxu0 %v327
    %500 = vmatprep.subr.bf16.mxu0 %v320
    %501 = vmatpush1.bf16.msra.mxu0 %v319
    %502 = vmatprep.subr.bf16.mxu0 0
    %503 = vmatpush2.bf16.msra.mxu0 0
    %504 = vmatprep.subr.bf16.mxu0 0
    %505 = vmatpush2.bf16.msra.mxu0 0
    %506 = vmatprep.subr.bf16.mxu0 0
    %507 = vmatpush2.bf16.msra.mxu0 0
    %508 = vmatprep.subr.bf16.mxu0 0
    %509 = vmatpush2.bf16.msra.mxu0 0
    %510 = vmatprep.subr.bf16.mxu0 0
    %511 = vmatpush2.bf16.msra.mxu0 0
    %512 = vmatprep.subr.bf16.mxu0 0
    %513 = vmatpush2.bf16.msra.mxu0 0
    %514 = vmatprep.subr.bf16.mxu0 0
    %515 = vmatpush2.bf16.msra.mxu0 0
    %516 = vmatprep.subr.bf16.mxu0 0
    %517 = vmatpush2.bf16.msra.mxu0 0
    %518 = vmatprep.mubr.bf16.mxu0 0
    %519 = vmatmul.mubr.bf16.gmra.mxu0 %v121
    %v520 = vpop.f32.mrf.mxu0
    %v521 = vadd.f32 0.0, %v520
    %v522 = vpop.f32.mrf.mxu0
    %v523 = vadd.f32 0.0, %v522
    %v524 = vpop.f32.mrf.mxu0
    %v525 = vpop.f32.mrf.mxu0
    %526 = vdwg.mxu0
    %527 = vmatprep.subr.bf16.mxu0 %v378
    %528 = vmatpush1.bf16.msra.mxu0 %v377
    %529 = vmatprep.subr.bf16.mxu0 %v370
    %530 = vmatpush1.bf16.msra.mxu0 %v369
    %531 = vmatprep.subr.bf16.mxu0 %v362
    %532 = vmatpush1.bf16.msra.mxu0 %v361
    %533 = vmatprep.subr.bf16.mxu0 %v354
    %534 = vmatpush1.bf16.msra.mxu0 %v353
    %535 = vmatprep.subr.bf16.mxu0 %v346
    %536 = vmatpush1.bf16.msra.mxu0 %v345
    %537 = vmatprep.subr.bf16.mxu0 %v338
    %538 = vmatpush1.bf16.msra.mxu0 %v337
    %539 = vmatprep.subr.bf16.mxu0 %v330
    %540 = vmatpush1.bf16.msra.mxu0 %v329
    %541 = vmatprep.subr.bf16.mxu0 %v322
    %542 = vmatpush1.bf16.msra.mxu0 %v321
    %543 = vmatprep.subr.bf16.mxu0 0
    %544 = vmatpush2.bf16.msra.mxu0 0
    %545 = vmatprep.subr.bf16.mxu0 0
    %546 = vmatpush2.bf16.msra.mxu0 0
    %547 = vmatprep.subr.bf16.mxu0 0
    %548 = vmatpush2.bf16.msra.mxu0 0
    %549 = vmatprep.subr.bf16.mxu0 0
    %550 = vmatpush2.bf16.msra.mxu0 0
    %551 = vmatprep.subr.bf16.mxu0 0
    %552 = vmatpush2.bf16.msra.mxu0 0
    %553 = vmatprep.subr.bf16.mxu0 0
    %554 = vmatpush2.bf16.msra.mxu0 0
    %555 = vmatprep.subr.bf16.mxu0 0
    %556 = vmatpush2.bf16.msra.mxu0 0
    %557 = vmatprep.subr.bf16.mxu0 0
    %558 = vmatpush2.bf16.msra.mxu0 0
    %559 = vmatprep.mubr.bf16.mxu0 0
    %560 = vmatmul.mubr.bf16.gmra.mxu0 %v121
    %v561 = vpop.f32.mrf.mxu0
    %v562 = vadd.f32 0.0, %v561
    %v563 = vpop.f32.mrf.mxu0
    %v564 = vadd.f32 0.0, %v563
    %v565 = vpop.f32.mrf.mxu0
    %v566 = vpop.f32.mrf.mxu0
    %567 = vdwg.mxu0
    %568 = vmatprep.subr.bf16.mxu0 %v380
    %569 = vmatpush1.bf16.msra.mxu0 %v379
    %570 = vmatprep.subr.bf16.mxu0 %v372
    %571 = vmatpush1.bf16.msra.mxu0 %v371
    %572 = vmatprep.subr.bf16.mxu0 %v364
    %573 = vmatpush1.bf16.msra.mxu0 %v363
    %574 = vmatprep.subr.bf16.mxu0 %v356
    %575 = vmatpush1.bf16.msra.mxu0 %v355
    %576 = vmatprep.subr.bf16.mxu0 %v348
    %577 = vmatpush1.bf16.msra.mxu0 %v347
    %578 = vmatprep.subr.bf16.mxu0 %v340
    %579 = vmatpush1.bf16.msra.mxu0 %v339
    %580 = vmatprep.subr.bf16.mxu0 %v332
    %581 = vmatpush1.bf16.msra.mxu0 %v331
    %582 = vmatprep.subr.bf16.mxu0 %v324
    %583 = vmatpush1.bf16.msra.mxu0 %v323
    %584 = vmatprep.subr.bf16.mxu0 0
    %585 = vmatpush2.bf16.msra.mxu0 0
    %586 = vmatprep.subr.bf16.mxu0 0
    %587 = vmatpush2.bf16.msra.mxu0 0
    %588 = vmatprep.subr.bf16.mxu0 0
    %589 = vmatpush2.bf16.msra.mxu0 0
    %590 = vmatprep.subr.bf16.mxu0 0
    %591 = vmatpush2.bf16.msra.mxu0 0
    %592 = vmatprep.subr.bf16.mxu0 0
    %593 = vmatpush2.bf16.msra.mxu0 0
    %594 = vmatprep.subr.bf16.mxu0 0
    %595 = vmatpush2.bf16.msra.mxu0 0
    %596 = vmatprep.subr.bf16.mxu0 0
    %597 = vmatpush2.bf16.msra.mxu0 0
    %598 = vmatprep.subr.bf16.mxu0 0
    %599 = vmatpush2.bf16.msra.mxu0 0
    %600 = vmatprep.mubr.bf16.mxu0 0
    %601 = vmatmul.mubr.bf16.gmra.mxu0 %v121
    %v602 = vpop.f32.mrf.mxu0
    %v603 = vadd.f32 0.0, %v602
    %v604 = vpop.f32.mrf.mxu0
    %v605 = vadd.f32 0.0, %v604
    %v606 = vpop.f32.mrf.mxu0
    %v607 = vpop.f32.mrf.mxu0
    %608 = vdwg.mxu0
    %609 = vmatprep.subr.bf16.mxu0 %v374
    %610 = vmatpush1.bf16.msra.mxu0 %v373
    %611 = vmatprep.subr.bf16.mxu0 %v366
    %612 = vmatpush1.bf16.msra.mxu0 %v365
    %613 = vmatprep.subr.bf16.mxu0 %v358
    %614 = vmatpush1.bf16.msra.mxu0 %v357
    %615 = vmatprep.subr.bf16.mxu0 %v350
    %616 = vmatpush1.bf16.msra.mxu0 %v349
    %617 = vmatprep.subr.bf16.mxu0 %v342
    %618 = vmatpush1.bf16.msra.mxu0 %v341
    %619 = vmatprep.subr.bf16.mxu0 %v334
    %620 = vmatpush1.bf16.msra.mxu0 %v333
    %621 = vmatprep.subr.bf16.mxu0 %v326
    %622 = vmatpush1.bf16.msra.mxu0 %v325
    %623 = vmatprep.subr.bf16.mxu0 %v318
    %624 = vmatpush1.bf16.msra.mxu0 %v317
    %625 = vmatprep.subr.bf16.mxu0 0
    %626 = vmatpush2.bf16.msra.mxu0 0
    %627 = vmatprep.subr.bf16.mxu0 0
    %628 = vmatpush2.bf16.msra.mxu0 0
    %629 = vmatprep.subr.bf16.mxu0 0
    %630 = vmatpush2.bf16.msra.mxu0 0
    %631 = vmatprep.subr.bf16.mxu0 0
    %632 = vmatpush2.bf16.msra.mxu0 0
    %633 = vmatprep.subr.bf16.mxu0 0
    %634 = vmatpush2.bf16.msra.mxu0 0
    %635 = vmatprep.subr.bf16.mxu0 0
    %636 = vmatpush2.bf16.msra.mxu0 0
    %637 = vmatprep.subr.bf16.mxu0 0
    %638 = vmatpush2.bf16.msra.mxu0 0
    %639 = vmatprep.subr.bf16.mxu0 0
    %640 = vmatpush2.bf16.msra.mxu0 0
    %641 = vmatprep.mubr.bf16.mxu0 0
    %642 = vmatmul.mubr.bf16.gmra.mxu0 %v118
    %v643 = vpop.f32.mrf.mxu0
    %v644 = vadd.f32 %v480, %v643
    %v645 = vpop.f32.mrf.mxu0
    %v646 = vadd.f32 %v482, %v645
    %v647 = vpop.f32.mrf.mxu0
    %v648 = vpop.f32.mrf.mxu0
    %649 = vdwg.mxu0
    %650 = vmatprep.subr.bf16.mxu0 %v376
    %651 = vmatpush1.bf16.msra.mxu0 %v375
    %652 = vmatprep.subr.bf16.mxu0 %v368
    %653 = vmatpush1.bf16.msra.mxu0 %v367
    %654 = vmatprep.subr.bf16.mxu0 %v360
    %655 = vmatpush1.bf16.msra.mxu0 %v359
    %656 = vmatprep.subr.bf16.mxu0 %v352
    %657 = vmatpush1.bf16.msra.mxu0 %v351
    %658 = vmatprep.subr.bf16.mxu0 %v344
    %659 = vmatpush1.bf16.msra.mxu0 %v343
    %660 = vmatprep.subr.bf16.mxu0 %v336
    %661 = vmatpush1.bf16.msra.mxu0 %v335
    %662 = vmatprep.subr.bf16.mxu0 %v328
    %663 = vmatpush1.bf16.msra.mxu0 %v327
    %664 = vmatprep.subr.bf16.mxu0 %v320
    %665 = vmatpush1.bf16.msra.mxu0 %v319
    %666 = vmatprep.subr.bf16.mxu0 0
    %667 = vmatpush2.bf16.msra.mxu0 0
    %668 = vmatprep.subr.bf16.mxu0 0
    %669 = vmatpush2.bf16.msra.mxu0 0
    %670 = vmatprep.subr.bf16.mxu0 0
    %671 = vmatpush2.bf16.msra.mxu0 0
    %672 = vmatprep.subr.bf16.mxu0 0
    %673 = vmatpush2.bf16.msra.mxu0 0
    %674 = vmatprep.subr.bf16.mxu0 0
    %675 = vmatpush2.bf16.msra.mxu0 0
    %676 = vmatprep.subr.bf16.mxu0 0
    %677 = vmatpush2.bf16.msra.mxu0 0
    %678 = vmatprep.subr.bf16.mxu0 0
    %679 = vmatpush2.bf16.msra.mxu0 0
    %680 = vmatprep.subr.bf16.mxu0 0
    %681 = vmatpush2.bf16.msra.mxu0 0
    %682 = vmatprep.mubr.bf16.mxu0 0
    %683 = vmatmul.mubr.bf16.gmra.mxu0 %v118
    %v684 = vpop.f32.mrf.mxu0
    %v685 = vadd.f32 %v521, %v684
    %v686 = vpop.f32.mrf.mxu0
    %v687 = vadd.f32 %v523, %v686
    %v688 = vpop.f32.mrf.mxu0
    %v689 = vpop.f32.mrf.mxu0
    %690 = vdwg.mxu0
    %691 = vmatprep.subr.bf16.mxu0 %v378
    %692 = vmatpush1.bf16.msra.mxu0 %v377
    %693 = vmatprep.subr.bf16.mxu0 %v370
    %694 = vmatpush1.bf16.msra.mxu0 %v369
    %695 = vmatprep.subr.bf16.mxu0 %v362
    %696 = vmatpush1.bf16.msra.mxu0 %v361
    %697 = vmatprep.subr.bf16.mxu0 %v354
    %698 = vmatpush1.bf16.msra.mxu0 %v353
    %699 = vmatprep.subr.bf16.mxu0 %v346
    %700 = vmatpush1.bf16.msra.mxu0 %v345
    %701 = vmatprep.subr.bf16.mxu0 %v338
    %702 = vmatpush1.bf16.msra.mxu0 %v337
    %703 = vmatprep.subr.bf16.mxu0 %v330
    %704 = vmatpush1.bf16.msra.mxu0 %v329
    %705 = vmatprep.subr.bf16.mxu0 %v322
    %706 = vmatpush1.bf16.msra.mxu0 %v321
    %707 = vmatprep.subr.bf16.mxu0 0
    %708 = vmatpush2.bf16.msra.mxu0 0
    %709 = vmatprep.subr.bf16.mxu0 0
    %710 = vmatpush2.bf16.msra.mxu0 0
    %711 = vmatprep.subr.bf16.mxu0 0
    %712 = vmatpush2.bf16.msra.mxu0 0
    %713 = vmatprep.subr.bf16.mxu0 0
    %714 = vmatpush2.bf16.msra.mxu0 0
    %715 = vmatprep.subr.bf16.mxu0 0
    %716 = vmatpush2.bf16.msra.mxu0 0
    %717 = vmatprep.subr.bf16.mxu0 0
    %718 = vmatpush2.bf16.msra.mxu0 0
    %719 = vmatprep.subr.bf16.mxu0 0
    %720 = vmatpush2.bf16.msra.mxu0 0
    %721 = vmatprep.subr.bf16.mxu0 0
    %722 = vmatpush2.bf16.msra.mxu0 0
    %723 = vmatprep.mubr.bf16.mxu0 0
    %724 = vmatmul.mubr.bf16.gmra.mxu0 %v118
    %v725 = vpop.f32.mrf.mxu0
    %v726 = vadd.f32 %v562, %v725
    %v727 = vpop.f32.mrf.mxu0
    %v728 = vadd.f32 %v564, %v727
    %v729 = vpop.f32.mrf.mxu0
    %v730 = vpop.f32.mrf.mxu0
    %731 = vdwg.mxu0
    %732 = vmatprep.subr.bf16.mxu0 %v380
    %733 = vmatpush1.bf16.msra.mxu0 %v379
    %734 = vmatprep.subr.bf16.mxu0 %v372
    %735 = vmatpush1.bf16.msra.mxu0 %v371
    %736 = vmatprep.subr.bf16.mxu0 %v364
    %737 = vmatpush1.bf16.msra.mxu0 %v363
    %738 = vmatprep.subr.bf16.mxu0 %v356
    %739 = vmatpush1.bf16.msra.mxu0 %v355
    %740 = vmatprep.subr.bf16.mxu0 %v348
    %741 = vmatpush1.bf16.msra.mxu0 %v347
    %742 = vmatprep.subr.bf16.mxu0 %v340
    %743 = vmatpush1.bf16.msra.mxu0 %v339
    %744 = vmatprep.subr.bf16.mxu0 %v332
    %745 = vmatpush1.bf16.msra.mxu0 %v331
    %746 = vmatprep.subr.bf16.mxu0 %v324
    %747 = vmatpush1.bf16.msra.mxu0 %v323
    %748 = vmatprep.subr.bf16.mxu0 0
    %749 = vmatpush2.bf16.msra.mxu0 0
    %750 = vmatprep.subr.bf16.mxu0 0
    %751 = vmatpush2.bf16.msra.mxu0 0
    %752 = vmatprep.subr.bf16.mxu0 0
    %753 = vmatpush2.bf16.msra.mxu0 0
    %754 = vmatprep.subr.bf16.mxu0 0
    %755 = vmatpush2.bf16.msra.mxu0 0
    %756 = vmatprep.subr.bf16.mxu0 0
    %757 = vmatpush2.bf16.msra.mxu0 0
    %758 = vmatprep.subr.bf16.mxu0 0
    %759 = vmatpush2.bf16.msra.mxu0 0
    %760 = vmatprep.subr.bf16.mxu0 0
    %761 = vmatpush2.bf16.msra.mxu0 0
    %762 = vmatprep.subr.bf16.mxu0 0
    %763 = vmatpush2.bf16.msra.mxu0 0
    %764 = vmatprep.mubr.bf16.mxu0 0
    %765 = vmatmul.mubr.bf16.gmra.mxu0 %v118
    %v766 = vpop.f32.mrf.mxu0
    %v767 = vadd.f32 %v603, %v766
    %v768 = vpop.f32.mrf.mxu0
    %v769 = vadd.f32 %v605, %v768
    %v770 = vpop.f32.mrf.mxu0
    %v771 = vpop.f32.mrf.mxu0
    %772 = vdwg.mxu0
    %773 = vmatprep.subr.bf16.mxu0 %v374
    %774 = vmatpush1.bf16.msra.mxu0 %v373
    %775 = vmatprep.subr.bf16.mxu0 %v366
    %776 = vmatpush1.bf16.msra.mxu0 %v365
    %777 = vmatprep.subr.bf16.mxu0 %v358
    %778 = vmatpush1.bf16.msra.mxu0 %v357
    %779 = vmatprep.subr.bf16.mxu0 %v350
    %780 = vmatpush1.bf16.msra.mxu0 %v349
    %781 = vmatprep.subr.bf16.mxu0 %v342
    %782 = vmatpush1.bf16.msra.mxu0 %v341
    %783 = vmatprep.subr.bf16.mxu0 %v334
    %784 = vmatpush1.bf16.msra.mxu0 %v333
    %785 = vmatprep.subr.bf16.mxu0 %v326
    %786 = vmatpush1.bf16.msra.mxu0 %v325
    %787 = vmatprep.subr.bf16.mxu0 %v318
    %788 = vmatpush1.bf16.msra.mxu0 %v317
    %789 = vmatprep.subr.bf16.mxu0 0
    %790 = vmatpush2.bf16.msra.mxu0 0
    %791 = vmatprep.subr.bf16.mxu0 0
    %792 = vmatpush2.bf16.msra.mxu0 0
    %793 = vmatprep.subr.bf16.mxu0 0
    %794 = vmatpush2.bf16.msra.mxu0 0
    %795 = vmatprep.subr.bf16.mxu0 0
    %796 = vmatpush2.bf16.msra.mxu0 0
    %797 = vmatprep.subr.bf16.mxu0 0
    %798 = vmatpush2.bf16.msra.mxu0 0
    %799 = vmatprep.subr.bf16.mxu0 0
    %800 = vmatpush2.bf16.msra.mxu0 0
    %801 = vmatprep.subr.bf16.mxu0 0
    %802 = vmatpush2.bf16.msra.mxu0 0
    %803 = vmatprep.subr.bf16.mxu0 0
    %804 = vmatpush2.bf16.msra.mxu0 0
    %805 = vmatprep.mubr.bf16.mxu0 0
    %806 = vmatmul.mubr.bf16.gmra.mxu0 %v124
    %v807 = vpop.f32.mrf.mxu0
    %v808 = vadd.f32 0.0, %v807
    %v809 = vpop.f32.mrf.mxu0
    %v810 = vadd.f32 0.0, %v809
    %v811 = vpop.f32.mrf.mxu0
    %v812 = vpop.f32.mrf.mxu0
    %813 = vdwg.mxu0
    %814 = vmatprep.subr.bf16.mxu0 %v376
    %815 = vmatpush1.bf16.msra.mxu0 %v375
    %816 = vmatprep.subr.bf16.mxu0 %v368
    %817 = vmatpush1.bf16.msra.mxu0 %v367
    %818 = vmatprep.subr.bf16.mxu0 %v360
    %819 = vmatpush1.bf16.msra.mxu0 %v359
    %820 = vmatprep.subr.bf16.mxu0 %v352
    %821 = vmatpush1.bf16.msra.mxu0 %v351
    %822 = vmatprep.subr.bf16.mxu0 %v344
    %823 = vmatpush1.bf16.msra.mxu0 %v343
    %824 = vmatprep.subr.bf16.mxu0 %v336
    %825 = vmatpush1.bf16.msra.mxu0 %v335
    %826 = vmatprep.subr.bf16.mxu0 %v328
    %827 = vmatpush1.bf16.msra.mxu0 %v327
    %828 = vmatprep.subr.bf16.mxu0 %v320
    %829 = vmatpush1.bf16.msra.mxu0 %v319
    %830 = vmatprep.subr.bf16.mxu0 0
    %831 = vmatpush2.bf16.msra.mxu0 0
    %832 = vmatprep.subr.bf16.mxu0 0
    %833 = vmatpush2.bf16.msra.mxu0 0
    %834 = vmatprep.subr.bf16.mxu0 0
    %835 = vmatpush2.bf16.msra.mxu0 0
    %836 = vmatprep.subr.bf16.mxu0 0
    %837 = vmatpush2.bf16.msra.mxu0 0
    %838 = vmatprep.subr.bf16.mxu0 0
    %839 = vmatpush2.bf16.msra.mxu0 0
    %840 = vmatprep.subr.bf16.mxu0 0
    %841 = vmatpush2.bf16.msra.mxu0 0
    %842 = vmatprep.subr.bf16.mxu0 0
    %843 = vmatpush2.bf16.msra.mxu0 0
    %844 = vmatprep.subr.bf16.mxu0 0
    %845 = vmatpush2.bf16.msra.mxu0 0
    %846 = vmatprep.mubr.bf16.mxu0 0
    %847 = vmatmul.mubr.bf16.gmra.mxu0 %v124
    %v848 = vpop.f32.mrf.mxu0
    %v849 = vadd.f32 0.0, %v848
    %v850 = vpop.f32.mrf.mxu0
    %v851 = vadd.f32 0.0, %v850
    %v852 = vpop.f32.mrf.mxu0
    %v853 = vpop.f32.mrf.mxu0
    %854 = vdwg.mxu0
    %855 = vmatprep.subr.bf16.mxu0 %v378
    %856 = vmatpush1.bf16.msra.mxu0 %v377
    %857 = vmatprep.subr.bf16.mxu0 %v370
    %858 = vmatpush1.bf16.msra.mxu0 %v369
    %859 = vmatprep.subr.bf16.mxu0 %v362
    %860 = vmatpush1.bf16.msra.mxu0 %v361
    %861 = vmatprep.subr.bf16.mxu0 %v354
    %862 = vmatpush1.bf16.msra.mxu0 %v353
    %863 = vmatprep.subr.bf16.mxu0 %v346
    %864 = vmatpush1.bf16.msra.mxu0 %v345
    %865 = vmatprep.subr.bf16.mxu0 %v338
    %866 = vmatpush1.bf16.msra.mxu0 %v337
    %867 = vmatprep.subr.bf16.mxu0 %v330
    %868 = vmatpush1.bf16.msra.mxu0 %v329
    %869 = vmatprep.subr.bf16.mxu0 %v322
    %870 = vmatpush1.bf16.msra.mxu0 %v321
    %871 = vmatprep.subr.bf16.mxu0 0
    %872 = vmatpush2.bf16.msra.mxu0 0
    %873 = vmatprep.subr.bf16.mxu0 0
    %874 = vmatpush2.bf16.msra.mxu0 0
    %875 = vmatprep.subr.bf16.mxu0 0
    %876 = vmatpush2.bf16.msra.mxu0 0
    %877 = vmatprep.subr.bf16.mxu0 0
    %878 = vmatpush2.bf16.msra.mxu0 0
    %879 = vmatprep.subr.bf16.mxu0 0
    %880 = vmatpush2.bf16.msra.mxu0 0
    %881 = vmatprep.subr.bf16.mxu0 0
    %882 = vmatpush2.bf16.msra.mxu0 0
    %883 = vmatprep.subr.bf16.mxu0 0
    %884 = vmatpush2.bf16.msra.mxu0 0
    %885 = vmatprep.subr.bf16.mxu0 0
    %886 = vmatpush2.bf16.msra.mxu0 0
    %887 = vmatprep.mubr.bf16.mxu0 0
    %888 = vmatmul.mubr.bf16.gmra.mxu0 %v124
    %v889 = vpop.f32.mrf.mxu0
    %v890 = vadd.f32 0.0, %v889
    %v891 = vpop.f32.mrf.mxu0
    %v892 = vadd.f32 0.0, %v891
    %v893 = vpop.f32.mrf.mxu0
    %v894 = vpop.f32.mrf.mxu0
    %895 = vdwg.mxu0
    %896 = vmatprep.subr.bf16.mxu0 %v380
    %897 = vmatpush1.bf16.msra.mxu0 %v379
    %898 = vmatprep.subr.bf16.mxu0 %v372
    %899 = vmatpush1.bf16.msra.mxu0 %v371
    %900 = vmatprep.subr.bf16.mxu0 %v364
    %901 = vmatpush1.bf16.msra.mxu0 %v363
    %902 = vmatprep.subr.bf16.mxu0 %v356
    %903 = vmatpush1.bf16.msra.mxu0 %v355
    %904 = vmatprep.subr.bf16.mxu0 %v348
    %905 = vmatpush1.bf16.msra.mxu0 %v347
    %906 = vmatprep.subr.bf16.mxu0 %v340
    %907 = vmatpush1.bf16.msra.mxu0 %v339
    %908 = vmatprep.subr.bf16.mxu0 %v332
    %909 = vmatpush1.bf16.msra.mxu0 %v331
    %910 = vmatprep.subr.bf16.mxu0 %v324
    %911 = vmatpush1.bf16.msra.mxu0 %v323
    %912 = vmatprep.subr.bf16.mxu0 0
    %913 = vmatpush2.bf16.msra.mxu0 0
    %914 = vmatprep.subr.bf16.mxu0 0
    %915 = vmatpush2.bf16.msra.mxu0 0
    %916 = vmatprep.subr.bf16.mxu0 0
    %917 = vmatpush2.bf16.msra.mxu0 0
    %918 = vmatprep.subr.bf16.mxu0 0
    %919 = vmatpush2.bf16.msra.mxu0 0
    %920 = vmatprep.subr.bf16.mxu0 0
    %921 = vmatpush2.bf16.msra.mxu0 0
    %922 = vmatprep.subr.bf16.mxu0 0
    %923 = vmatpush2.bf16.msra.mxu0 0
    %924 = vmatprep.subr.bf16.mxu0 0
    %925 = vmatpush2.bf16.msra.mxu0 0
    %926 = vmatprep.subr.bf16.mxu0 0
    %927 = vmatpush2.bf16.msra.mxu0 0
    %928 = vmatprep.mubr.bf16.mxu0 0
    %929 = vmatmul.mubr.bf16.gmra.mxu0 %v124
    %v930 = vpop.f32.mrf.mxu0
    %v931 = vadd.f32 0.0, %v930
    %v932 = vpop.f32.mrf.mxu0
    %v933 = vadd.f32 0.0, %v932
    %v934 = vpop.f32.mrf.mxu0
    %v935 = vpop.f32.mrf.mxu0
    %936 = vdwg.mxu0
    %v937 = vadd.f32 %v644, %v808
    %v938 = vadd.f32 %v646, %v810
    %v939 = vadd.f32 %v685, %v849
    %v940 = vadd.f32 %v687, %v851
    %v941 = vadd.f32 %v726, %v890
    %v942 = vadd.f32 %v728, %v892
    %v943 = vadd.f32 %v767, %v931
    %v944 = vadd.f32 %v769, %v933
    %v945 = vld [vmem:[#allocation7] sm:$0xff]
    %v947 = vlaneseq
    %v948 = vshrl.u32 %v947, 7
    %v949 = vsub.s32 0, %v948
    %v950 = vrot.slane %v945, %v949
    %v951 = vlaneseq
    %v952 = vshrl.u32 %v951, 7
    %v953 = vsub.s32 1, %v952
    %v954 = vrot.slane %v945, %v953
    %v955 = vlaneseq
    %v956 = vshrl.u32 %v955, 7
    %v957 = vsub.s32 2, %v956
    %v958 = vrot.slane %v945, %v957
    %v959 = vlaneseq
    %v960 = vshrl.u32 %v959, 7
    %v961 = vsub.s32 3, %v960
    %v962 = vrot.slane %v945, %v961
    %v963 = vlaneseq
    %v964 = vshrl.u32 %v963, 7
    %v965 = vsub.s32 4, %v964
    %v966 = vrot.slane %v945, %v965
    %v967 = vlaneseq
    %v968 = vshrl.u32 %v967, 7
    %v969 = vsub.s32 5, %v968
    %v970 = vrot.slane %v945, %v969
    %v971 = vlaneseq
    %v972 = vshrl.u32 %v971, 7
    %v973 = vsub.s32 6, %v972
    %v974 = vrot.slane %v945, %v973
    %v975 = vlaneseq
    %v976 = vshrl.u32 %v975, 7
    %v977 = vsub.s32 7, %v976
    %v978 = vrot.slane %v945, %v977
    %v987 = vsub.f32 %v937, %v950
    %v988 = vsub.f32 %v938, %v954
    %v989 = vsub.f32 %v939, %v958
    %v990 = vsub.f32 %v940, %v962
    %v991 = vsub.f32 %v941, %v966
    %v992 = vsub.f32 %v942, %v970
    %v993 = vsub.f32 %v943, %v974
    %v994 = vsub.f32 %v944, %v978
    %v995 = vtanh.pop %v987
    %v996 = vtanh.pop %v988
    %v997 = vtanh.pop %v989
    %v998 = vtanh.pop %v990
    %v999 = vtanh.pop %v991
    %v1000 = vtanh.pop %v992
    %v1001 = vtanh.pop %v993
    %v1002 = vtanh.pop %v994
    %v1003 = vmul.f32 %v995, %v995
    %v1004 = vmul.f32 %v996, %v996
    %v1005 = vmul.f32 %v997, %v997
    %v1006 = vmul.f32 %v998, %v998
    %v1007 = vmul.f32 %v999, %v999
    %v1008 = vmul.f32 %v1000, %v1000
    %v1009 = vmul.f32 %v1001, %v1001
    %v1010 = vmul.f32 %v1002, %v1002
    %v1011 = vsub.f32 1.0, %v1003
    %v1012 = vsub.f32 1.0, %v1004
    %v1013 = vsub.f32 1.0, %v1005
    %v1014 = vsub.f32 1.0, %v1006
    %v1015 = vsub.f32 1.0, %v1007
    %v1016 = vsub.f32 1.0, %v1008
    %v1017 = vsub.f32 1.0, %v1009
    %v1018 = vsub.f32 1.0, %v1010
    %v1027 = vcombine.low %v1011, %v1012
    %v1028 = vcombine.low %v1013, %v1014
    %v1030 = vunpack.c.l.s4 1983009808
    %v1031 = vunpack.c.0.s8 %v1030
    %v1032 = vlaneseq
    %v1033 = vshrl.u32 %v1032, 7
    %v1034 = vsub.s32 %v1031, %v1033
    %v1035 = vrot.slane %v1027, %v1034
    %v1037 = vunpack.c.l.s4 1983009808
    %v1038 = vunpack.c.0.s8 %v1037
    %v1039 = vlaneseq
    %v1040 = vshrl.u32 %v1039, 7
    %v1041 = vsub.s32 %v1038, %v1040
    %v1042 = vrot.slane %v1028, %v1041
    %v1043 = vcombine.low %v1035, %v1042
    %v1044 = vcombine.low %v1015, %v1016
    %v1045 = vcombine.low %v1017, %v1018
    %v1047 = vunpack.c.l.s4 1983009808
    %v1048 = vunpack.c.0.s8 %v1047
    %v1049 = vlaneseq
    %v1050 = vshrl.u32 %v1049, 7
    %v1051 = vsub.s32 %v1048, %v1050
    %v1052 = vrot.slane %v1044, %v1051
    %v1054 = vunpack.c.l.s4 1983009808
    %v1055 = vunpack.c.0.s8 %v1054
    %v1056 = vlaneseq
    %v1057 = vshrl.u32 %v1056, 7
    %v1058 = vsub.s32 %v1055, %v1057
    %v1059 = vrot.slane %v1045, %v1058
    %v1060 = vcombine.low %v1052, %v1059
    %1063 = vst [vmem:[#allocation8] sm:$0xff] %v1043
    %1064 = vst [vmem:[#allocation8 + $0x8] sm:$0xff] %v1060
    // Predicated region
    $region26: #{tpu_custom_call.1} parent=1 // pred_check
      _
    $region27: #{tpu_custom_call.1} parent=1 // pred_check_branch
      %1066 = sbr.rel (0) target = $region29
    $region28: #{tpu_custom_call.1} parent=1 // pred_region
      %s1068 = ssub.s32 256, 256
      %1069 = vsyncadd [#allocation4], %s1068
      %s1071 = sshll.u32 [#allocation8], 4
      %s1072 = int_to_ptr.vmem [resolvable:$true] %s1071
      %1074 = dma.vmem_to_hbm [thread:$0]  %s1072, 256, %s3, [#allocation4]
    $region29: #{tpu_custom_call.1} parent=1 // pred_fallthru
      _
    // Predicated region
    $region30: #{tpu_custom_call.1} parent=1 // pred_check
      _
    $region31: #{tpu_custom_call.1} parent=1 // pred_check_branch
      %1076 = sbr.rel (0) target = $region33
    $region32: #{tpu_custom_call.1} parent=1 // pred_region
      %1077 = dma.done [#allocation4], 256
    $region33: #{tpu_custom_call.1} parent=1 // pred_fallthru
      _
    %1078 = vsyncpa [#allocation3], 1
    %1079 = vsyncpa [#allocation6], 1
    %1080 = vsyncpa [#allocation4], 1

</llo_original>
